<compile_context>
chip_gen: v7x
topology: tpu7x:2x2x1
jax: 0.10.0
libtpu: 0.0.40
codegen_flags: <defaults>
</compile_context>

<pallas_src>
import jax
import jax.numpy as jnp
from jax.experimental import pallas as pl
from jax.experimental.pallas import tpu as pltpu

LANE = 128  # vreg lane width / MXU-friendly padding for the *resident* hidden dims


def _round_up(n, m):
    return ((n + m - 1) // m) * m


def _pad2(a, rows, cols):
    return jnp.pad(a, ((0, rows - a.shape[0]), (0, cols - a.shape[1])))


def _choose_tile_b(b, tile_max):
    """Batch tile: multiple of 8 (sublane), <= tile_max, and prefer >= 2 grid
    steps so the 'parallel' batch axis can shard across v7x's two TensorCores
    (harmless no-op on single-TC v5e/v6e)."""
    tile = min(tile_max, _round_up(pl.cdiv(b, 2), 8))
    return max(8, tile)


def dpl_dqn_kernel(x_ref, w1_ref, b1_ref, w2_ref, b2_ref, w3_ref, b3_ref, o_ref):
    """One batch tile of the fused 3-layer MLP.

    x_ref:  (TILE_B, n_in)   activations (f32 or bf16), natural (unpadded) width
    w1_ref: (n_in,   H1_P)   pre-transposed weights, hidden dim zero-padded
    w2_ref: (H1_P,   H2_P)
    w3_ref: (H2_P,   n_out)  natural (unpadded) output width
    b*_ref: (1, ...)         zero-padded biases (f32)
    o_ref:  (TILE_B, n_out)  f32 output
    """
    dt = x_ref.dtype  # MXU input dtype (f32 or bf16); accumulation stays f32

    # Layer 1: Linear + sigmoid
    l1 = jnp.dot(x_ref[...], w1_ref[...], preferred_element_type=jnp.float32)
    h1 = jax.nn.sigmoid(l1 + b1_ref[...])

    # Layer 2: Linear + sigmoid
    l2 = jnp.dot(h1.astype(dt), w2_ref[...], preferred_element_type=jnp.float32)
    h2 = jax.nn.sigmoid(l2 + b2_ref[...])

    # Layer 3: Linear + relu + sigmoid
    l3 = jnp.dot(h2.astype(dt), w3_ref[...], preferred_element_type=jnp.float32)
    l3 = l3 + b3_ref[...]
    o_ref[...] = jax.nn.sigmoid(jnp.maximum(l3, 0.0)).astype(o_ref.dtype)


def dpl_dqn_forward(x, params, *, tile_b=4096, compute_dtype=jnp.float32):
    """x: [B, n_inputs] f32. params: dict of (in, out) weights and (1, out) biases.

    compute_dtype=jnp.bfloat16 is the recommended setting on v6e/v7x (halves the
    dominant x stream, native bf16 MXU path); keep f32 on v5e.
    """
    w1, b1 = params["w1"], params["b1"]
    w2, b2 = params["w2"], params["b2"]
    w3, b3 = params["w3"], params["b3"]

    B, n_in = x.shape
    h1d, h2d, n_out = w1.shape[1], w2.shape[1], w3.shape[1]

    # Pad only the resident hidden dims (VMEM-resident weights; no HBM streaming
    # cost). Input / output widths stay natural.
    h1_p = _round_up(h1d, LANE)
    h2_p = _round_up(h2d, LANE)

    w1p = _pad2(w1, n_in, h1_p).astype(compute_dtype)
    w2p = _pad2(w2, h1_p, h2_p).astype(compute_dtype)
    w3p = _pad2(w3, h2_p, n_out).astype(compute_dtype)
    b1p = _pad2(b1, 1, h1_p).astype(jnp.float32)
    b2p = _pad2(b2, 1, h2_p).astype(jnp.float32)
    b3p = b3.astype(jnp.float32)

    # Batch handling: no host-side pad pass for B >= 8 (partial last block is
    # handled by Pallas OOB masking; compute is row-independent). Tiny batches
    # are padded once to 8 rows to keep the in-kernel matmul sublane-aligned.
    if B < 8:
        xp = jnp.pad(x, ((0, 8 - B), (0, 0)))
        b_eff = 8
    else:
        xp = x
        b_eff = B
    xp = xp.astype(compute_dtype)

    tile_b = _choose_tile_b(b_eff, tile_b)
    grid = (pl.cdiv(b_eff, tile_b),)

    batch_tile = lambda i: (i, 0)   # stream activations / output over the grid
    resident = lambda i: (0, 0)     # weights / biases: same block every step

    dsize = jnp.dtype(compute_dtype).itemsize
    cost = pl.CostEstimate(
        flops=int(2 * b_eff * (n_in * h1_p + h1_p * h2_p + h2_p * n_out)),
        transcendentals=int(b_eff * (h1_p + h2_p + n_out)),
        bytes_accessed=int(
            dsize * (xp.size + w1p.size + w2p.size + w3p.size)
            + 4 * (b_eff * n_out + b1p.size + b2p.size + b3p.size)
        ),
    )

    out = pl.pallas_call(
        dpl_dqn_kernel,
        out_shape=jax.ShapeDtypeStruct((b_eff, n_out), jnp.float32),
        grid=grid,
        in_specs=[
            pl.BlockSpec((tile_b, n_in), batch_tile),   # last dim = full array dim
            pl.BlockSpec((n_in, h1_p), resident),
            pl.BlockSpec((1, h1_p), resident),
            pl.BlockSpec((h1_p, h2_p), resident),
            pl.BlockSpec((1, h2_p), resident),
            pl.BlockSpec((h2_p, n_out), resident),
            pl.BlockSpec((1, n_out), resident),
        ],
        out_specs=pl.BlockSpec((tile_b, n_out), batch_tile),
        compiler_params=pltpu.CompilerParams(
            dimension_semantics=("parallel",),
        ),
        cost_estimate=cost,
    )(xp, w1p, b1p, w2p, b2p, w3p, b3p)

    return out[:B]


def init_params(key, n_inputs, n_nperl, n_outputs):
    """PyTorch nn.Linear default init U(-1/sqrt(fan_in), 1/sqrt(fan_in)).
    Weights stored as (in, out) — transposed relative to torch's (out, in)."""
    ks = jax.random.split(key, 6)

    def lin(kw, kb, fan_in, fan_out):
        bound = 1.0 / jnp.sqrt(float(fan_in))
        w = jax.random.uniform(kw, (fan_in, fan_out), jnp.float32, -bound, bound)
        b = jax.random.uniform(kb, (1, fan_out), jnp.float32, -bound, bound)
        return w, b

    w1, b1 = lin(ks[0], ks[1], n_inputs, n_nperl[0])
    w2, b2 = lin(ks[2], ks[3], n_nperl[0], n_nperl[1])
    w3, b3 = lin(ks[4], ks[5], n_nperl[1], n_outputs)
    return {"w1": w1, "b1": b1, "w2": w2, "b2": b2, "w3": w3, "b3": b3}


if __name__ == "__main__":
    # Small shapes consistent with the module's constructor signature.
    n_inputs = 8
    n_neurons_per_layers = (32, 32)
    n_outputs = 4
    batch = 2

    key = jax.random.PRNGKey(0)
    kx, kp = jax.random.split(key)
    x = jax.random.normal(kx, (batch, n_inputs), jnp.float32)
    params = init_params(kp, n_inputs, n_neurons_per_layers, n_outputs)

    out = jax.block_until_ready(dpl_dqn_forward(x, params))

    # Pure-JAX reference of the same forward semantics.
    # NOTE: relu before the final sigmoid (outputs in [0.5, 1)) mirrors the
    # original PyTorch module on purpose.
    def ref(x, p):
        a1 = jax.nn.sigmoid(x @ p["w1"] + p["b1"])
        a2 = jax.nn.sigmoid(a1 @ p["w2"] + p["b2"])
        l3 = a2 @ p["w3"] + p["b3"]
        return jax.nn.sigmoid(jnp.maximum(l3, 0.0))

    expected = ref(x, params)
    assert out.shape == (batch, n_outputs)
    assert jnp.allclose(out, expected, atol=1e-5, rtol=1e-5)

    # bf16 compute path (recommended default on v6e/v7x): same semantics,
    # f32 accumulation, looser tolerance from input/weight quantization.
    out_bf16 = jax.block_until_ready(
        dpl_dqn_forward(x, params, compute_dtype=jnp.bfloat16)
    )
    assert out_bf16.shape == (batch, n_outputs)
    assert jnp.allclose(out_bf16, expected, atol=5e-2, rtol=5e-2)

    # Larger batch exercising the multi-step grid + partial last block
    # (B not a multiple of the tile / of 8): relies on Pallas OOB masking.
    big_b = 1000
    xb = jax.random.normal(jax.random.PRNGKey(1), (big_b, n_inputs), jnp.float32)
    out_big = jax.block_until_ready(dpl_dqn_forward(xb, params, tile_b=256))
    assert out_big.shape == (big_b, n_outputs)
    assert jnp.allclose(out_big, ref(xb, params), atol=1e-5, rtol=1e-5)

    print("KERNEL_OK")
</pallas_src>

<mosaic_0001>
module attributes {stable_mosaic.version = 11 : i64} {
  func.func @dpl_dqn_kernel(%arg0: i32, %arg1: memref<8x8xf32, #tpu.memory_space<vmem>>, %arg2: memref<8x128xf32, #tpu.memory_space<vmem>>, %arg3: memref<1x128xf32, #tpu.memory_space<vmem>>, %arg4: memref<128x128xf32, #tpu.memory_space<vmem>>, %arg5: memref<1x128xf32, #tpu.memory_space<vmem>>, %arg6: memref<128x4xf32, #tpu.memory_space<vmem>>, %arg7: memref<1x4xf32, #tpu.memory_space<vmem>>, %arg8: memref<8x4xf32, #tpu.memory_space<vmem>>) attributes {dimension_semantics = [#tpu.dimension_semantics<parallel>], iteration_bounds = array<i64: 1>, scalar_prefetch = 0 : i64, scratch_operands = 0 : i64, tpu.core_type = #tpu.core_type<tc>, window_params = [{transform_indices = @transform_0, window_bounds = array<i64: 8, 8>}, {pipeline_mode = #tpu.pipeline_mode<synchronous>, transform_indices = @transform_1, window_bounds = array<i64: 8, 128>}, {pipeline_mode = #tpu.pipeline_mode<synchronous>, transform_indices = @transform_2, window_bounds = array<i64: 1, 128>}, {pipeline_mode = #tpu.pipeline_mode<synchronous>, transform_indices = @transform_3, window_bounds = array<i64: 128, 128>}, {pipeline_mode = #tpu.pipeline_mode<synchronous>, transform_indices = @transform_4, window_bounds = array<i64: 1, 128>}, {pipeline_mode = #tpu.pipeline_mode<synchronous>, transform_indices = @transform_5, window_bounds = array<i64: 128, 4>}, {pipeline_mode = #tpu.pipeline_mode<synchronous>, transform_indices = @transform_6, window_bounds = array<i64: 1, 4>}, {transform_indices = @transform_7, window_bounds = array<i64: 8, 4>}]} {
    %c0 = arith.constant 0 : index
    %c0_0 = arith.constant 0 : index
    %0 = vector.load %arg1[%c0, %c0_0] : memref<8x8xf32, #tpu.memory_space<vmem>>, vector<8x8xf32>
    %c0_1 = arith.constant 0 : index
    %c0_2 = arith.constant 0 : index
    %1 = vector.load %arg2[%c0_1, %c0_2] : memref<8x128xf32, #tpu.memory_space<vmem>>, vector<8x128xf32>
    %cst = arith.constant dense<0.000000e+00> : vector<8x128xf32>
    %2 = tpu.matmul %0, %1, %cst {dimension_numbers = #tpu.dot_dimension_numbers<[1], [0], [0], [1], [0, 0, 1, 1], [], []>} : vector<8x8xf32>, vector<8x128xf32>, vector<8x128xf32> -> vector<8x128xf32>
    %c0_3 = arith.constant 0 : index
    %c0_4 = arith.constant 0 : index
    %3 = vector.load %arg3[%c0_3, %c0_4] : memref<1x128xf32, #tpu.memory_space<vmem>>, vector<1x128xf32>
    %4 = vector.broadcast %3 : vector<1x128xf32> to vector<8x128xf32>
    %5 = arith.addf %2, %4 : vector<8x128xf32>
    %6 = arith.negf %5 : vector<8x128xf32>
    %7 = math.exp %6 : vector<8x128xf32>
    %cst_5 = arith.constant 1.000000e+00 : f32
    %8 = vector.broadcast %cst_5 : f32 to vector<8x128xf32>
    %9 = arith.addf %8, %7 : vector<8x128xf32>
    %10 = arith.divf %8, %9 : vector<8x128xf32>
    %c0_6 = arith.constant 0 : index
    %c0_7 = arith.constant 0 : index
    %11 = vector.load %arg4[%c0_6, %c0_7] : memref<128x128xf32, #tpu.memory_space<vmem>>, vector<128x128xf32>
    %cst_8 = arith.constant dense<0.000000e+00> : vector<8x128xf32>
    %12 = tpu.matmul %10, %11, %cst_8 {dimension_numbers = #tpu.dot_dimension_numbers<[1], [0], [0], [1], [0, 0, 1, 1], [], []>} : vector<8x128xf32>, vector<128x128xf32>, vector<8x128xf32> -> vector<8x128xf32>
    %c0_9 = arith.constant 0 : index
    %c0_10 = arith.constant 0 : index
    %13 = vector.load %arg5[%c0_9, %c0_10] : memref<1x128xf32, #tpu.memory_space<vmem>>, vector<1x128xf32>
    %14 = vector.broadcast %13 : vector<1x128xf32> to vector<8x128xf32>
    %15 = arith.addf %12, %14 : vector<8x128xf32>
    %16 = arith.negf %15 : vector<8x128xf32>
    %17 = math.exp %16 : vector<8x128xf32>
    %cst_11 = arith.constant 1.000000e+00 : f32
    %18 = vector.broadcast %cst_11 : f32 to vector<8x128xf32>
    %19 = arith.addf %18, %17 : vector<8x128xf32>
    %20 = arith.divf %18, %19 : vector<8x128xf32>
    %c0_12 = arith.constant 0 : index
    %c0_13 = arith.constant 0 : index
    %21 = vector.load %arg6[%c0_12, %c0_13] : memref<128x4xf32, #tpu.memory_space<vmem>>, vector<128x4xf32>
    %cst_14 = arith.constant dense<0.000000e+00> : vector<8x4xf32>
    %22 = tpu.matmul %20, %21, %cst_14 {dimension_numbers = #tpu.dot_dimension_numbers<[1], [0], [0], [1], [0, 0, 1, 1], [], []>} : vector<8x128xf32>, vector<128x4xf32>, vector<8x4xf32> -> vector<8x4xf32>
    %c0_15 = arith.constant 0 : index
    %c0_16 = arith.constant 0 : index
    %23 = vector.load %arg7[%c0_15, %c0_16] : memref<1x4xf32, #tpu.memory_space<vmem>>, vector<1x4xf32>
    %24 = vector.broadcast %23 : vector<1x4xf32> to vector<8x4xf32>
    %25 = arith.addf %22, %24 : vector<8x4xf32>
    %cst_17 = arith.constant 0.000000e+00 : f32
    %26 = vector.broadcast %cst_17 : f32 to vector<8x4xf32>
    %27 = arith.maximumf %25, %26 : vector<8x4xf32>
    %28 = arith.negf %27 : vector<8x4xf32>
    %29 = math.exp %28 : vector<8x4xf32>
    %cst_18 = arith.constant 1.000000e+00 : f32
    %30 = vector.broadcast %cst_18 : f32 to vector<8x4xf32>
    %31 = arith.addf %30, %29 : vector<8x4xf32>
    %32 = arith.divf %30, %31 : vector<8x4xf32>
    %c0_19 = arith.constant 0 : index
    %c0_20 = arith.constant 0 : index
    %33 = vector.load %arg8[%c0_19, %c0_20] : memref<8x4xf32, #tpu.memory_space<vmem>>, vector<8x4xf32>
    tpu.vector_store %arg8[%c0_19, %c0_20], %32 {strides = array<i32>} : memref<8x4xf32, #tpu.memory_space<vmem>>, vector<8x4xf32>,
    return
  }
  func.func @transform_0(%arg0: i32) -> (i32, i32) {
    %c0_i32 = arith.constant 0 : i32
    %c0_i32_0 = arith.constant 0 : i32
    return %arg0, %c0_i32 : i32, i32
  }
  func.func @transform_1(%arg0: i32) -> (i32, i32) {
    %c0_i32 = arith.constant 0 : i32
    %c0_i32_0 = arith.constant 0 : i32
    %c0_i32_1 = arith.constant 0 : i32
    return %c0_i32, %c0_i32_0 : i32, i32
  }
  func.func @transform_2(%arg0: i32) -> (i32, i32) {
    %c0_i32 = arith.constant 0 : i32
    %c0_i32_0 = arith.constant 0 : i32
    %c0_i32_1 = arith.constant 0 : i32
    return %c0_i32, %c0_i32_0 : i32, i32
  }
  func.func @transform_3(%arg0: i32) -> (i32, i32) {
    %c0_i32 = arith.constant 0 : i32
    %c0_i32_0 = arith.constant 0 : i32
    %c0_i32_1 = arith.constant 0 : i32
    return %c0_i32, %c0_i32_0 : i32, i32
  }
  func.func @transform_4(%arg0: i32) -> (i32, i32) {
    %c0_i32 = arith.constant 0 : i32
    %c0_i32_0 = arith.constant 0 : i32
    %c0_i32_1 = arith.constant 0 : i32
    return %c0_i32, %c0_i32_0 : i32, i32
  }
  func.func @transform_5(%arg0: i32) -> (i32, i32) {
    %c0_i32 = arith.constant 0 : i32
    %c0_i32_0 = arith.constant 0 : i32
    %c0_i32_1 = arith.constant 0 : i32
    return %c0_i32, %c0_i32_0 : i32, i32
  }
  func.func @transform_6(%arg0: i32) -> (i32, i32) {
    %c0_i32 = arith.constant 0 : i32
    %c0_i32_0 = arith.constant 0 : i32
    %c0_i32_1 = arith.constant 0 : i32
    return %c0_i32, %c0_i32_0 : i32, i32
  }
  func.func @transform_7(%arg0: i32) -> (i32, i32) {
    %c0_i32 = arith.constant 0 : i32
    %c0_i32_0 = arith.constant 0 : i32
    return %arg0, %c0_i32 : i32, i32
  }
}

</mosaic_0001>

<llo_original>
// kernel: tpu_custom_call.1
$region0: #{tpu_custom_call.1}
  #allocation0 [shape = 'u32[]', space=smem, size = 0x4, offset = 0x4, fixed_abs, tag = 'smem constant byte address 0x4 - core index']
  #allocation1 [shape = 'u32[144,128]{1,0:T(1,128)}', space=vmem, size = 0x12000, scoped, tag = 'internal scratch']
  %s0 = inlined_call_operand.vmem [shape: f32[8,8], index: 0, kind: input, shape index: {}]
  %s1 = inlined_call_operand.hbm [shape: f32[8,128], index: 1, kind: input, shape index: {}]
  %s2 = inlined_call_operand.vmem [shape: f32[1,128], index: 2, kind: input, shape index: {}]
  %s3 = inlined_call_operand.vmem [shape: f32[128,128], index: 3, kind: input, shape index: {}]
  %s4 = inlined_call_operand.vmem [shape: f32[1,128], index: 4, kind: input, shape index: {}]
  %s5 = inlined_call_operand.vmem [shape: f32[128,4], index: 5, kind: input, shape index: {}]
  %s6 = inlined_call_operand.vmem [shape: f32[1,4], index: 6, kind: input, shape index: {}]
  %s7 = inlined_call_operand.vmem [shape: f32[8,4], index: 7, kind: output, shape index: {}]
  %s8 = sld [smem:[#allocation0]]
  $region42: #{tpu_custom_call.1} parent=0
    _
  %s10 = ssub.s32 1, %s8
  %s11 = scalar_select 0, %s10, %s8
  $region1: #{tpu_custom_call.1} parent=0
    #allocation2 [shape = 'u8[4096]{0}', space=vmem, size = 0x1000, scoped, tag = 'input window, operand 1, single buffered']
    #allocation3 [shape = 's32[1]{0}', space=sflag, size = 0x4, scoped, tag = 'scoped memory for tpu_custom_call.1']
    %12 = vsyncpa [#allocation3], 0
    // Predicated region
    $region2: #{tpu_custom_call.1} parent=1 // pred_check
      _
    $region3: #{tpu_custom_call.1} parent=1 // pred_check_branch
      %14 = sbr.rel (0) target = $region5
    $region4: #{tpu_custom_call.1} parent=1 // pred_region
      _
    $region5: #{tpu_custom_call.1} parent=1 // pred_fallthru
      _
    // Predicated region
    $region6: #{tpu_custom_call.1} parent=1 // pred_check
      _
    $region7: #{tpu_custom_call.1} parent=1 // pred_check_branch
      %16 = sbr.rel (0) target = $region9
    $region8: #{tpu_custom_call.1} parent=1 // pred_region
      %s18 = ssub.s32 128, 128
      %19 = vsyncadd [#allocation3], %s18
      %s21 = sshll.u32 [#allocation2], 4
      %s22 = int_to_ptr.vmem [resolvable:$true] %s21
      %24 = dma.hbm_to_vmem [thread:$0]  %s1, 128, %s22, [#allocation3]
    $region9: #{tpu_custom_call.1} parent=1 // pred_fallthru
      _
    // Predicated region
    $region10: #{tpu_custom_call.1} parent=1 // pred_check
      _
    $region11: #{tpu_custom_call.1} parent=1 // pred_check_branch
      %26 = sbr.rel (0) target = $region13
    $region12: #{tpu_custom_call.1} parent=1 // pred_region
      _
    $region13: #{tpu_custom_call.1} parent=1 // pred_fallthru
      _
    // Predicated region
    $region14: #{tpu_custom_call.1} parent=1 // pred_check
      _
    $region15: #{tpu_custom_call.1} parent=1 // pred_check_branch
      %28 = sbr.rel (0) target = $region17
    $region16: #{tpu_custom_call.1} parent=1 // pred_region
      _
    $region17: #{tpu_custom_call.1} parent=1 // pred_fallthru
      _
    // Predicated region
    $region18: #{tpu_custom_call.1} parent=1 // pred_check
      _
    $region19: #{tpu_custom_call.1} parent=1 // pred_check_branch
      %30 = sbr.rel (0) target = $region21
    $region20: #{tpu_custom_call.1} parent=1 // pred_region
      _
    $region21: #{tpu_custom_call.1} parent=1 // pred_fallthru
      _
    // Predicated region
    $region22: #{tpu_custom_call.1} parent=1 // pred_check
      _
    $region23: #{tpu_custom_call.1} parent=1 // pred_check_branch
      %32 = sbr.rel (0) target = $region25
    $region24: #{tpu_custom_call.1} parent=1 // pred_region
      _
    $region25: #{tpu_custom_call.1} parent=1 // pred_fallthru
      _
    // Predicated region
    $region26: #{tpu_custom_call.1} parent=1 // pred_check
      _
    $region27: #{tpu_custom_call.1} parent=1 // pred_check_branch
      %34 = sbr.rel (0) target = $region29
    $region28: #{tpu_custom_call.1} parent=1 // pred_region
      _
    $region29: #{tpu_custom_call.1} parent=1 // pred_fallthru
      _
    // Predicated region
    $region30: #{tpu_custom_call.1} parent=1 // pred_check
      _
    $region31: #{tpu_custom_call.1} parent=1 // pred_check_branch
      %36 = sbr.rel (0) target = $region33
    $region32: #{tpu_custom_call.1} parent=1 // pred_region
      %37 = dma.done [#allocation3], 128
    $region33: #{tpu_custom_call.1} parent=1 // pred_fallthru
      _
    %v38 = vld [vmem:[%s0] sm:$0xff]
    %v39 = vld [vmem:[#allocation2] sm:$0xff]
    %v40 = vld [vmem:[%s2] sm:$0x1]
    %v42 = vlaneseq
    %v43 = vshrl.u32 %v42, 7
    %v44 = vsub.s32 0, %v43
    %v45 = vrot.slane %v40, %v44
    %vm47 = vcmask 64512
    %v49 = vsel %vm47, %v38, 0
    %51 = vmatprep.subr.mxu0 0.0
    %52 = vmatpush1.msra.mxu0 %v39
    %53 = vmatprep.subr.mxu0 0.0
    %54 = vmatpush1.msra.mxu0 0.0
    %55 = vmatprep.subr.mxu0 0.0
    %56 = vmatpush1.msra.mxu0 0.0
    %57 = vmatprep.subr.mxu0 0.0
    %58 = vmatpush1.msra.mxu0 0.0
    %59 = vmatprep.subr.mxu0 0.0
    %60 = vmatpush1.msra.mxu0 0.0
    %61 = vmatprep.subr.mxu0 0.0
    %62 = vmatpush1.msra.mxu0 0.0
    %63 = vmatprep.subr.mxu0 0.0
    %64 = vmatpush1.msra.mxu0 0.0
    %65 = vmatprep.subr.mxu0 0.0
    %66 = vmatpush1.msra.mxu0 0.0
    %67 = vmatprep.subr.mxu0 0.0
    %68 = vmatpush1.msra.mxu0 0.0
    %69 = vmatprep.subr.mxu0 0.0
    %70 = vmatpush1.msra.mxu0 0.0
    %71 = vmatprep.subr.mxu0 0.0
    %72 = vmatpush1.msra.mxu0 0.0
    %73 = vmatprep.subr.mxu0 0.0
    %74 = vmatpush1.msra.mxu0 0.0
    %75 = vmatprep.subr.mxu0 0.0
    %76 = vmatpush1.msra.mxu0 0.0
    %77 = vmatprep.subr.mxu0 0.0
    %78 = vmatpush1.msra.mxu0 0.0
    %79 = vmatprep.subr.mxu0 0.0
    %80 = vmatpush1.msra.mxu0 0.0
    %81 = vmatprep.subr.mxu0 0.0
    %82 = vmatpush1.msra.mxu0 0.0
    %83 = vmatprep.subr.mxu0 0.0
    %84 = vmatpush1.msra.mxu0 0.0
    %85 = vmatprep.subr.mxu0 0.0
    %86 = vmatpush1.msra.mxu0 0.0
    %87 = vmatprep.subr.mxu0 0.0
    %88 = vmatpush1.msra.mxu0 0.0
    %89 = vmatprep.subr.mxu0 0.0
    %90 = vmatpush1.msra.mxu0 0.0
    %91 = vmatprep.subr.mxu0 0.0
    %92 = vmatpush1.msra.mxu0 0.0
    %93 = vmatprep.subr.mxu0 0.0
    %94 = vmatpush1.msra.mxu0 0.0
    %95 = vmatprep.subr.mxu0 0.0
    %96 = vmatpush1.msra.mxu0 0.0
    %97 = vmatprep.subr.mxu0 0.0
    %98 = vmatpush1.msra.mxu0 0.0
    %99 = vmatprep.subr.mxu0 0.0
    %100 = vmatpush1.msra.mxu0 0.0
    %101 = vmatprep.subr.mxu0 0.0
    %102 = vmatpush1.msra.mxu0 0.0
    %103 = vmatprep.subr.mxu0 0.0
    %104 = vmatpush1.msra.mxu0 0.0
    %105 = vmatprep.subr.mxu0 0.0
    %106 = vmatpush1.msra.mxu0 0.0
    %107 = vmatprep.subr.mxu0 0.0
    %108 = vmatpush1.msra.mxu0 0.0
    %109 = vmatprep.subr.mxu0 0.0
    %110 = vmatpush1.msra.mxu0 0.0
    %111 = vmatprep.subr.mxu0 0.0
    %112 = vmatpush1.msra.mxu0 0.0
    %113 = vmatprep.subr.mxu0 0.0
    %114 = vmatpush1.msra.mxu0 0.0
    %115 = vmatprep.mubr.f32.mxu0 0.0
    %116 = vmatmul.mubr.f32.gmra.mrb[0].mxu0 %v49
    %v117 = vpop.f32.mrb[0].mxu0
    %v118 = vadd.f32 %v45, %v117
    %v119 = vpop.f32.mrb[0].mxu0
    %120 = vdwg.mxu0
    %v121 = vxor.u32 %v118, 2147483648
    %v122 = vmul.f32 %v121, 1.442695
    %v123 = vpow.pop %v122
    %v124 = vadd.f32 %v123, 1.0
    %v125 = vrcp.pop %v124
    %v126 = vmul.f32 1.0, %v125
    %v127 = vld [vmem:[%s3] sm:$0xff]
    %v128 = vld [vmem:[%s3 + $0x8] sm:$0xff]
    %v129 = vld [vmem:[%s3 + $0x10] sm:$0xff]
    %v130 = vld [vmem:[%s3 + $0x18] sm:$0xff]
    %v131 = vld [vmem:[%s3 + $0x20] sm:$0xff]
    %v132 = vld [vmem:[%s3 + $0x28] sm:$0xff]
    %v133 = vld [vmem:[%s3 + $0x30] sm:$0xff]
    %v134 = vld [vmem:[%s3 + $0x38] sm:$0xff]
    %v135 = vld [vmem:[%s3 + $0x40] sm:$0xff]
    %v136 = vld [vmem:[%s3 + $0x48] sm:$0xff]
    %v137 = vld [vmem:[%s3 + $0x50] sm:$0xff]
    %v138 = vld [vmem:[%s3 + $0x58] sm:$0xff]
    %v139 = vld [vmem:[%s3 + $0x60] sm:$0xff]
    %v140 = vld [vmem:[%s3 + $0x68] sm:$0xff]
    %v141 = vld [vmem:[%s3 + $0x70] sm:$0xff]
    %v142 = vld [vmem:[%s3 + $0x78] sm:$0xff]
    %v143 = vld [vmem:[%s4] sm:$0x1]
    %v145 = vlaneseq
    %v146 = vshrl.u32 %v145, 7
    %v147 = vsub.s32 0, %v146
    %v148 = vrot.slane %v143, %v147
    %150 = vmatprep.subr.mxu0 0.0
    %151 = vmatpush1.msra.mxu0 %v127
    %152 = vmatprep.subr.mxu0 0.0
    %153 = vmatpush1.msra.mxu0 %v128
    %154 = vmatprep.subr.mxu0 0.0
    %155 = vmatpush1.msra.mxu0 %v129
    %156 = vmatprep.subr.mxu0 0.0
    %157 = vmatpush1.msra.mxu0 %v130
    %158 = vmatprep.subr.mxu0 0.0
    %159 = vmatpush1.msra.mxu0 %v131
    %160 = vmatprep.subr.mxu0 0.0
    %161 = vmatpush1.msra.mxu0 %v132
    %162 = vmatprep.subr.mxu0 0.0
    %163 = vmatpush1.msra.mxu0 %v133
    %164 = vmatprep.subr.mxu0 0.0
    %165 = vmatpush1.msra.mxu0 %v134
    %166 = vmatprep.subr.mxu0 0.0
    %167 = vmatpush1.msra.mxu0 %v135
    %168 = vmatprep.subr.mxu0 0.0
    %169 = vmatpush1.msra.mxu0 %v136
    %170 = vmatprep.subr.mxu0 0.0
    %171 = vmatpush1.msra.mxu0 %v137
    %172 = vmatprep.subr.mxu0 0.0
    %173 = vmatpush1.msra.mxu0 %v138
    %174 = vmatprep.subr.mxu0 0.0
    %175 = vmatpush1.msra.mxu0 %v139
    %176 = vmatprep.subr.mxu0 0.0
    %177 = vmatpush1.msra.mxu0 %v140
    %178 = vmatprep.subr.mxu0 0.0
    %179 = vmatpush1.msra.mxu0 %v141
    %180 = vmatprep.subr.mxu0 0.0
    %181 = vmatpush1.msra.mxu0 %v142
    %182 = vmatprep.subr.mxu0 0.0
    %183 = vmatpush1.msra.mxu0 0.0
    %184 = vmatprep.subr.mxu0 0.0
    %185 = vmatpush1.msra.mxu0 0.0
    %186 = vmatprep.subr.mxu0 0.0
    %187 = vmatpush1.msra.mxu0 0.0
    %188 = vmatprep.subr.mxu0 0.0
    %189 = vmatpush1.msra.mxu0 0.0
    %190 = vmatprep.subr.mxu0 0.0
    %191 = vmatpush1.msra.mxu0 0.0
    %192 = vmatprep.subr.mxu0 0.0
    %193 = vmatpush1.msra.mxu0 0.0
    %194 = vmatprep.subr.mxu0 0.0
    %195 = vmatpush1.msra.mxu0 0.0
    %196 = vmatprep.subr.mxu0 0.0
    %197 = vmatpush1.msra.mxu0 0.0
    %198 = vmatprep.subr.mxu0 0.0
    %199 = vmatpush1.msra.mxu0 0.0
    %200 = vmatprep.subr.mxu0 0.0
    %201 = vmatpush1.msra.mxu0 0.0
    %202 = vmatprep.subr.mxu0 0.0
    %203 = vmatpush1.msra.mxu0 0.0
    %204 = vmatprep.subr.mxu0 0.0
    %205 = vmatpush1.msra.mxu0 0.0
    %206 = vmatprep.subr.mxu0 0.0
    %207 = vmatpush1.msra.mxu0 0.0
    %208 = vmatprep.subr.mxu0 0.0
    %209 = vmatpush1.msra.mxu0 0.0
    %210 = vmatprep.subr.mxu0 0.0
    %211 = vmatpush1.msra.mxu0 0.0
    %212 = vmatprep.subr.mxu0 0.0
    %213 = vmatpush1.msra.mxu0 0.0
    %214 = vmatprep.mubr.f32.mxu0 0.0
    %215 = vmatmul.mubr.f32.gmra.mrb[0].mxu0 %v126
    %v216 = vpop.f32.mrb[0].mxu0
    %v217 = vadd.f32 %v148, %v216
    %v218 = vpop.f32.mrb[0].mxu0
    %219 = vdwg.mxu0
    %v220 = vxor.u32 %v217, 2147483648
    %v221 = vmul.f32 %v220, 1.442695
    %v222 = vpow.pop %v221
    %v223 = vadd.f32 %v222, 1.0
    %v224 = vrcp.pop %v223
    %v225 = vmul.f32 1.0, %v224
    %v226 = vld [vmem:[%s5] sm:$0xff]
    %v227 = vld [vmem:[%s5 + $0x8] sm:$0xff]
    %v228 = vld [vmem:[%s5 + $0x10] sm:$0xff]
    %v229 = vld [vmem:[%s5 + $0x18] sm:$0xff]
    %v230 = vld [vmem:[%s5 + $0x20] sm:$0xff]
    %v231 = vld [vmem:[%s5 + $0x28] sm:$0xff]
    %v232 = vld [vmem:[%s5 + $0x30] sm:$0xff]
    %v233 = vld [vmem:[%s5 + $0x38] sm:$0xff]
    %v234 = vld [vmem:[%s5 + $0x40] sm:$0xff]
    %v235 = vld [vmem:[%s5 + $0x48] sm:$0xff]
    %v236 = vld [vmem:[%s5 + $0x50] sm:$0xff]
    %v237 = vld [vmem:[%s5 + $0x58] sm:$0xff]
    %v238 = vld [vmem:[%s5 + $0x60] sm:$0xff]
    %v239 = vld [vmem:[%s5 + $0x68] sm:$0xff]
    %v240 = vld [vmem:[%s5 + $0x70] sm:$0xff]
    %v241 = vld [vmem:[%s5 + $0x78] sm:$0xff]
    %v242 = vld [vmem:[%s6] sm:$0x1]
    %v244 = vlaneseq
    %v245 = vshrl.u32 %v244, 7
    %v246 = vsub.s32 0, %v245
    %v247 = vrot.slane %v242, %v246
    %249 = vmatprep.subr.mxu0 0.0
    %250 = vmatpush1.msra.mxu0 %v226
    %251 = vmatprep.subr.mxu0 0.0
    %252 = vmatpush1.msra.mxu0 %v227
    %253 = vmatprep.subr.mxu0 0.0
    %254 = vmatpush1.msra.mxu0 %v228
    %255 = vmatprep.subr.mxu0 0.0
    %256 = vmatpush1.msra.mxu0 %v229
    %257 = vmatprep.subr.mxu0 0.0
    %258 = vmatpush1.msra.mxu0 %v230
    %259 = vmatprep.subr.mxu0 0.0
    %260 = vmatpush1.msra.mxu0 %v231
    %261 = vmatprep.subr.mxu0 0.0
    %262 = vmatpush1.msra.mxu0 %v232
    %263 = vmatprep.subr.mxu0 0.0
    %264 = vmatpush1.msra.mxu0 %v233
    %265 = vmatprep.subr.mxu0 0.0
    %266 = vmatpush1.msra.mxu0 %v234
    %267 = vmatprep.subr.mxu0 0.0
    %268 = vmatpush1.msra.mxu0 %v235
    %269 = vmatprep.subr.mxu0 0.0
    %270 = vmatpush1.msra.mxu0 %v236
    %271 = vmatprep.subr.mxu0 0.0
    %272 = vmatpush1.msra.mxu0 %v237
    %273 = vmatprep.subr.mxu0 0.0
    %274 = vmatpush1.msra.mxu0 %v238
    %275 = vmatprep.subr.mxu0 0.0
    %276 = vmatpush1.msra.mxu0 %v239
    %277 = vmatprep.subr.mxu0 0.0
    %278 = vmatpush1.msra.mxu0 %v240
    %279 = vmatprep.subr.mxu0 0.0
    %280 = vmatpush1.msra.mxu0 %v241
    %281 = vmatprep.subr.mxu0 0.0
    %282 = vmatpush1.msra.mxu0 0.0
    %283 = vmatprep.subr.mxu0 0.0
    %284 = vmatpush1.msra.mxu0 0.0
    %285 = vmatprep.subr.mxu0 0.0
    %286 = vmatpush1.msra.mxu0 0.0
    %287 = vmatprep.subr.mxu0 0.0
    %288 = vmatpush1.msra.mxu0 0.0
    %289 = vmatprep.subr.mxu0 0.0
    %290 = vmatpush1.msra.mxu0 0.0
    %291 = vmatprep.subr.mxu0 0.0
    %292 = vmatpush1.msra.mxu0 0.0
    %293 = vmatprep.subr.mxu0 0.0
    %294 = vmatpush1.msra.mxu0 0.0
    %295 = vmatprep.subr.mxu0 0.0
    %296 = vmatpush1.msra.mxu0 0.0
    %297 = vmatprep.subr.mxu0 0.0
    %298 = vmatpush1.msra.mxu0 0.0
    %299 = vmatprep.subr.mxu0 0.0
    %300 = vmatpush1.msra.mxu0 0.0
    %301 = vmatprep.subr.mxu0 0.0
    %302 = vmatpush1.msra.mxu0 0.0
    %303 = vmatprep.subr.mxu0 0.0
    %304 = vmatpush1.msra.mxu0 0.0
    %305 = vmatprep.subr.mxu0 0.0
    %306 = vmatpush1.msra.mxu0 0.0
    %307 = vmatprep.subr.mxu0 0.0
    %308 = vmatpush1.msra.mxu0 0.0
    %309 = vmatprep.subr.mxu0 0.0
    %310 = vmatpush1.msra.mxu0 0.0
    %311 = vmatprep.subr.mxu0 0.0
    %312 = vmatpush1.msra.mxu0 0.0
    %313 = vmatprep.mubr.f32.mxu0 0.0
    %314 = vmatmul.mubr.f32.gmra.mrb[0].mxu0 %v225
    %v315 = vpop.f32.mrb[0].mxu0
    %v316 = vadd.f32 %v247, %v315
    %v317 = vpop.f32.mrb[0].mxu0
    %318 = vdwg.mxu0
    %v319 = vmax.f32 %v316, 0.0
    %v320 = vxor.u32 %v319, 2147483648
    %v321 = vmul.f32 %v320, 1.442695
    %v322 = vpow.pop %v321
    %v323 = vadd.f32 %v322, 1.0
    %v324 = vrcp.pop %v323
    %v325 = vmul.f32 1.0, %v324
    %vm326 = vcmask 31744
    %327 = vst.msk [vmem:[%s7] sm:$0xff] %vm326, %v325
    // Predicated region
    $region34: #{tpu_custom_call.1} parent=1 // pred_check
      _
    $region35: #{tpu_custom_call.1} parent=1 // pred_check_branch
      %329 = sbr.rel (0) target = $region37
    $region36: #{tpu_custom_call.1} parent=1 // pred_region
      _
    $region37: #{tpu_custom_call.1} parent=1 // pred_fallthru
      _
    // Predicated region
    $region38: #{tpu_custom_call.1} parent=1 // pred_check
      _
    $region39: #{tpu_custom_call.1} parent=1 // pred_check_branch
      %331 = sbr.rel (0) target = $region41
    $region40: #{tpu_custom_call.1} parent=1 // pred_region
      _
    $region41: #{tpu_custom_call.1} parent=1 // pred_fallthru
      _
    %332 = vsyncpa [#allocation3], 1

</llo_original>
